<compile_context>
chip_gen: v6e
topology: v6e:2x2x1
jax: 0.10.0
libtpu: 0.0.40
codegen_flags: <defaults>
</compile_context>

<pallas_src>
import functools
import math

import jax
import jax.numpy as jnp
import numpy as np
from jax.experimental import pallas as pl
from jax.experimental.pallas import tpu as pltpu


def _round_up(x, m):
    return ((x + m - 1) // m) * m


def _pick_row_tile(B):
    """Batch-row tile: large enough to amortize per-grid-step overhead
    (~600 cycles), but keep >=2 'parallel' steps when the batch allows it
    (v7x has two TensorCores sharing the grid)."""
    if B < 16:
        return B                         # single step; block dims == array dims
    tb = -(-B // 2)                      # cdiv(B, 2)  -> at least two steps
    return min(512, _round_up(tb, 8))    # multiple of 8, capped


@functools.lru_cache(maxsize=None)
def _build_forward(B, self_dim, E, meta, dtype_name):
    """Build the fused forward for a fixed flattened batch B and group
    metadata meta = ((S_0, D_0), (S_1, D_1), ...) in call order."""
    dtype = jnp.dtype(dtype_name)
    G = len(meta)
    S_total = 1 + sum(S for S, _ in meta)
    N_out = S_total * E
    tb = _pick_row_tile(B)
    grid = (pl.cdiv(B, tb),)

    # row offset of each group inside other_embeddings (row 0 == self emb)
    row_offs, off = [], 1
    for S, _ in meta:
        row_offs.append(off)
        off += S

    def kernel(*refs):
        self_ref = refs[0]
        x_refs = refs[1:1 + G]
        ws_ref, bs_ref = refs[1 + G], refs[2 + G]
        grp_refs = refs[3 + G:3 + G + 3 * G]
        o_self_ref, o_other_ref = refs[3 + 4 * G], refs[4 + 4 * G]

        sv = self_ref[...]                                        # [tb, sd]

        # self embedding (also row 0 of other_embeddings)
        se = jnp.dot(sv, ws_ref[...], preferred_element_type=jnp.float32)
        se = jnp.maximum(se + bs_ref[...], 0.0)
        o_self_ref[...] = se.astype(o_self_ref.dtype)
        o_other_ref[:, 0:E] = se.astype(o_other_ref.dtype)

        # each "other" group: ReLU(self @ W_self_tiled + x @ W_x_blockdiag + b)
        for g, (S, D) in enumerate(meta):
            wself_r, wx_r, b_r = grp_refs[3 * g:3 * g + 3]
            xk = x_refs[g][...]                                   # [tb, S*D]
            acc = jnp.dot(sv, wself_r[...],
                          preferred_element_type=jnp.float32)     # [tb, S*E]
            acc = acc + jnp.dot(xk, wx_r[...],
                                preferred_element_type=jnp.float32)
            acc = jnp.maximum(acc + b_r[...], 0.0)
            c0 = row_offs[g] * E
            o_other_ref[:, c0:c0 + S * E] = acc.astype(o_other_ref.dtype)

    row_spec = lambda w: pl.BlockSpec((tb, w), lambda i: (i, 0))
    full_spec = lambda r, c: pl.BlockSpec((r, c), lambda i: (0, 0))

    in_specs = [row_spec(self_dim)]
    in_specs += [row_spec(S * D) for S, D in meta]
    in_specs += [full_spec(self_dim, E), full_spec(1, E)]
    for S, D in meta:
        in_specs += [full_spec(self_dim, S * E),
                     full_spec(S * D, S * E),
                     full_spec(1, S * E)]
    out_specs = [pl.BlockSpec((tb, E), lambda i: (i, 0)),
                 pl.BlockSpec((tb, N_out), lambda i: (i, 0))]
    out_shape = [jax.ShapeDtypeStruct((B, E), dtype),
                 jax.ShapeDtypeStruct((B, N_out), dtype)]

    # advisory cost estimate so XLA can overlap this tiny custom call
    flops = 2 * B * self_dim * E
    elems = B * self_dim + self_dim * E + E + B * (E + N_out)
    for S, D in meta:
        flops += 2 * B * (self_dim + S * D) * (S * E)
        elems += B * S * D + self_dim * S * E + (S * D) * (S * E) + S * E
    cost = pl.CostEstimate(flops=flops, transcendentals=0,
                           bytes_accessed=elems * dtype.itemsize)

    fused = pl.pallas_call(
        kernel,
        out_shape=out_shape,
        grid_spec=pltpu.PrefetchScalarGridSpec(
            num_scalar_prefetch=0,
            grid=grid,
            in_specs=in_specs,
            out_specs=out_specs),
        compiler_params=pltpu.CompilerParams(
            dimension_semantics=("parallel",)),
        cost_estimate=cost,
    )

    def forward(self_vec, xs, ws, bs, grp_weights):
        lead = self_vec.shape[:-1]
        args = [self_vec.reshape(B, self_dim)]
        args += [x.reshape(B, S * D) for x, (S, D) in zip(xs, meta)]
        args += [ws, bs.reshape(1, E)]
        for wst, wxbd, bt in grp_weights:
            args += [wst, wxbd, bt.reshape(1, -1)]
        self_emb, other_flat = fused(*args)
        return (self_emb.reshape(*lead, E),
                other_flat.reshape(*lead, S_total, E))

    return jax.jit(forward)


# ----------------------------------------------------------------------------
# Module: CatSelfEmbedding (num_layers=1, layer_norm=False)
# ----------------------------------------------------------------------------
class CatSelfEmbeddingPallas:
    def __init__(self, self_dim, others_shape_dict, d_embedding, key):
        self.self_dim = self_dim
        self.others_shape_dict = dict(others_shape_dict)
        self.d_embedding = d_embedding
        self.others_keys = sorted(others_shape_dict.keys())
        self.params = {}
        self._derived = {}   # (name, S) -> (W_self_tiled, W_x_blockdiag, b_tiled)

        def init_linear(k, in_dim, out_dim):
            # mimic torch.nn.Linear default init: U(-1/sqrt(in), 1/sqrt(in))
            kw, kb = jax.random.split(k)
            bound = 1.0 / math.sqrt(in_dim)
            w = jax.random.uniform(kw, (in_dim, out_dim), jnp.float32,
                                   -bound, bound)   # stored [K, N]
            b = jax.random.uniform(kb, (out_dim,), jnp.float32, -bound, bound)
            return w, b

        key, sub = jax.random.split(key)
        self.params["self_embedding"] = init_linear(sub, self_dim, d_embedding)
        for name in self.others_keys:
            if "mask" in name:
                continue
            key, sub = jax.random.split(key)
            in_dim = others_shape_dict[name][-1] + self_dim
            self.params[name + "_fc"] = init_linear(sub, in_dim, d_embedding)
        # TODO(synk): num_layers>1 / layer_norm=True variants not implemented
        # (reference defaults are num_layers=1, layer_norm=False).

    def _get_derived(self, name, S):
        ck = (name, S)
        if ck not in self._derived:
            w, b = self.params[name + "_fc"]
            w_self, w_x = w[:self.self_dim], w[self.self_dim:]
            self._derived[ck] = (
                jnp.tile(w_self, (1, S)),                       # [sd, S*E]
                jnp.kron(jnp.eye(S, dtype=w.dtype), w_x),       # [S*D, S*E]
                jnp.tile(b, S).reshape(1, -1),                  # [1, S*E]
            )
        return self._derived[ck]

    def __call__(self, self_vec, **inputs):
        meta, xs, grp_weights = [], [], []
        for k, x in inputs.items():          # kwargs order, as in the reference
            assert k in self.others_keys
            S, D = int(x.shape[-2]), int(x.shape[-1])
            assert D == self.others_shape_dict[k][-1], (k, x.shape)
            meta.append((S, D))
            xs.append(x)
            grp_weights.append(self._get_derived(k, S))

        lead = self_vec.shape[:-1]
        B = int(np.prod(lead)) if lead else 1
        fwd = _build_forward(B, self.self_dim, self.d_embedding,
                             tuple(meta), jnp.dtype(self_vec.dtype).name)
        ws, bs = self.params["self_embedding"]
        return fwd(self_vec, xs, ws, bs, grp_weights)


# ----------------------------------------------------------------------------
# Pure-JAX reference (for correctness check)
# ----------------------------------------------------------------------------
def reference_forward(mod, self_vec, **inputs):
    ws, bs = mod.params["self_embedding"]
    self_emb = jnp.maximum(self_vec @ ws + bs, 0.0)
    self_vec_ = self_vec[..., None, :]
    others = []
    for k, x in inputs.items():
        exp_shape = x.shape[:-1] + (mod.self_dim,)
        x_cat = jnp.concatenate([jnp.broadcast_to(self_vec_, exp_shape), x], -1)
        wk, bk = mod.params[k + "_fc"]
        others.append(jnp.maximum(x_cat @ wk + bk, 0.0))
    other_emb = jnp.concatenate([self_emb[..., None, :]] + others, axis=-2)
    return self_emb, other_emb


if __name__ == "__main__":
    key = jax.random.PRNGKey(0)

    batch = 2
    self_dim = 8
    d_embedding = 32
    others_shape_dict = {"agents": (3, 6), "landmarks": (5, 10)}

    k_mod, k_self, k_ag, k_lm, k2a, k2b, k2c = jax.random.split(key, 7)
    module = CatSelfEmbeddingPallas(self_dim, others_shape_dict,
                                    d_embedding, k_mod)

    self_vec = jax.random.normal(k_self, (batch, self_dim), jnp.float32)
    agents = jax.random.normal(k_ag, (batch, 3, 6), jnp.float32)
    landmarks = jax.random.normal(k_lm, (batch, 5, 10), jnp.float32)

    self_emb, other_emb = module(self_vec, agents=agents, landmarks=landmarks)
    self_emb = jax.block_until_ready(self_emb)
    other_emb = jax.block_until_ready(other_emb)

    assert self_emb.shape == (batch, d_embedding)
    assert other_emb.shape == (batch, 1 + 3 + 5, d_embedding)
    ref_self, ref_other = reference_forward(module, self_vec,
                                            agents=agents, landmarks=landmarks)
    np.testing.assert_allclose(np.asarray(self_emb), np.asarray(ref_self),
                               rtol=1e-5, atol=1e-5)
    np.testing.assert_allclose(np.asarray(other_emb), np.asarray(ref_other),
                               rtol=1e-5, atol=1e-5)

    # second check: larger batch exercising the multi-step grid + partial tail
    B2 = 40
    sv2 = jax.random.normal(k2a, (B2, self_dim), jnp.float32)
    ag2 = jax.random.normal(k2b, (B2, 3, 6), jnp.float32)
    lm2 = jax.random.normal(k2c, (B2, 5, 10), jnp.float32)
    s2, o2 = module(sv2, agents=ag2, landmarks=lm2)
    s2 = jax.block_until_ready(s2)
    o2 = jax.block_until_ready(o2)
    rs2, ro2 = reference_forward(module, sv2, agents=ag2, landmarks=lm2)
    np.testing.assert_allclose(np.asarray(s2), np.asarray(rs2),
                               rtol=1e-5, atol=1e-5)
    np.testing.assert_allclose(np.asarray(o2), np.asarray(ro2),
                               rtol=1e-5, atol=1e-5)

    print("KERNEL_OK")
</pallas_src>

<mosaic_0001>
module attributes {stable_mosaic.version = 11 : i64} {
  func.func @kernel(%arg0: i32, %arg1: memref<2x8xf32, #tpu.memory_space<vmem>>, %arg2: memref<2x18xf32, #tpu.memory_space<vmem>>, %arg3: memref<2x50xf32, #tpu.memory_space<vmem>>, %arg4: memref<8x32xf32, #tpu.memory_space<vmem>>, %arg5: memref<1x32xf32, #tpu.memory_space<vmem>>, %arg6: memref<8x96xf32, #tpu.memory_space<vmem>>, %arg7: memref<18x96xf32, #tpu.memory_space<vmem>>, %arg8: memref<1x96xf32, #tpu.memory_space<vmem>>, %arg9: memref<8x160xf32, #tpu.memory_space<vmem>>, %arg10: memref<50x160xf32, #tpu.memory_space<vmem>>, %arg11: memref<1x160xf32, #tpu.memory_space<vmem>>, %arg12: memref<2x32xf32, #tpu.memory_space<vmem>>, %arg13: memref<2x288xf32, #tpu.memory_space<vmem>>) attributes {dimension_semantics = [#tpu.dimension_semantics<parallel>], iteration_bounds = array<i64: 1>, scalar_prefetch = 0 : i64, scratch_operands = 0 : i64, tpu.core_type = #tpu.core_type<tc>, window_params = [{transform_indices = @transform_0, window_bounds = array<i64: 2, 8>}, {transform_indices = @transform_1, window_bounds = array<i64: 2, 18>}, {transform_indices = @transform_2, window_bounds = array<i64: 2, 50>}, {pipeline_mode = #tpu.pipeline_mode<synchronous>, transform_indices = @transform_3, window_bounds = array<i64: 8, 32>}, {pipeline_mode = #tpu.pipeline_mode<synchronous>, transform_indices = @transform_4, window_bounds = array<i64: 1, 32>}, {pipeline_mode = #tpu.pipeline_mode<synchronous>, transform_indices = @transform_5, window_bounds = array<i64: 8, 96>}, {pipeline_mode = #tpu.pipeline_mode<synchronous>, transform_indices = @transform_6, window_bounds = array<i64: 18, 96>}, {pipeline_mode = #tpu.pipeline_mode<synchronous>, transform_indices = @transform_7, window_bounds = array<i64: 1, 96>}, {pipeline_mode = #tpu.pipeline_mode<synchronous>, transform_indices = @transform_8, window_bounds = array<i64: 8, 160>}, {pipeline_mode = #tpu.pipeline_mode<synchronous>, transform_indices = @transform_9, window_bounds = array<i64: 50, 160>}, {pipeline_mode = #tpu.pipeline_mode<synchronous>, transform_indices = @transform_10, window_bounds = array<i64: 1, 160>}, {transform_indices = @transform_11, window_bounds = array<i64: 2, 32>}, {transform_indices = @transform_12, window_bounds = array<i64: 2, 288>}]} {
    %c0 = arith.constant 0 : index
    %c0_0 = arith.constant 0 : index
    %0 = vector.load %arg1[%c0, %c0_0] : memref<2x8xf32, #tpu.memory_space<vmem>>, vector<2x8xf32>
    %c0_1 = arith.constant 0 : index
    %c0_2 = arith.constant 0 : index
    %1 = vector.load %arg4[%c0_1, %c0_2] : memref<8x32xf32, #tpu.memory_space<vmem>>, vector<8x32xf32>
    %cst = arith.constant dense<0.000000e+00> : vector<2x32xf32>
    %2 = tpu.matmul %0, %1, %cst {dimension_numbers = #tpu.dot_dimension_numbers<[1], [0], [0], [1], [0, 0, 1, 1], [], []>} : vector<2x8xf32>, vector<8x32xf32>, vector<2x32xf32> -> vector<2x32xf32>
    %c0_3 = arith.constant 0 : index
    %c0_4 = arith.constant 0 : index
    %3 = vector.load %arg5[%c0_3, %c0_4] : memref<1x32xf32, #tpu.memory_space<vmem>>, vector<1x32xf32>
    %4 = vector.broadcast %3 : vector<1x32xf32> to vector<2x32xf32>
    %5 = arith.addf %2, %4 : vector<2x32xf32>
    %cst_5 = arith.constant 0.000000e+00 : f32
    %6 = vector.broadcast %cst_5 : f32 to vector<2x32xf32>
    %7 = arith.maximumf %5, %6 : vector<2x32xf32>
    %c0_6 = arith.constant 0 : index
    %c0_7 = arith.constant 0 : index
    %8 = vector.load %arg12[%c0_6, %c0_7] : memref<2x32xf32, #tpu.memory_space<vmem>>, vector<2x32xf32>
    tpu.vector_store %arg12[%c0_6, %c0_7], %7 {strides = array<i32>} : memref<2x32xf32, #tpu.memory_space<vmem>>, vector<2x32xf32>,
    %c0_8 = arith.constant 0 : index
    %c0_9 = arith.constant 0 : index
    %9 = vector.load %arg13[%c0_8, %c0_9] : memref<2x288xf32, #tpu.memory_space<vmem>>, vector<2x32xf32>
    tpu.vector_store %arg13[%c0_8, %c0_9], %7 {strides = array<i32>} : memref<2x288xf32, #tpu.memory_space<vmem>>, vector<2x32xf32>,
    %c0_10 = arith.constant 0 : index
    %c0_11 = arith.constant 0 : index
    %10 = vector.load %arg2[%c0_10, %c0_11] : memref<2x18xf32, #tpu.memory_space<vmem>>, vector<2x18xf32>
    %c0_12 = arith.constant 0 : index
    %c0_13 = arith.constant 0 : index
    %11 = vector.load %arg6[%c0_12, %c0_13] : memref<8x96xf32, #tpu.memory_space<vmem>>, vector<8x96xf32>
    %cst_14 = arith.constant dense<0.000000e+00> : vector<2x96xf32>
    %12 = tpu.matmul %0, %11, %cst_14 {dimension_numbers = #tpu.dot_dimension_numbers<[1], [0], [0], [1], [0, 0, 1, 1], [], []>} : vector<2x8xf32>, vector<8x96xf32>, vector<2x96xf32> -> vector<2x96xf32>
    %c0_15 = arith.constant 0 : index
    %c0_16 = arith.constant 0 : index
    %13 = vector.load %arg7[%c0_15, %c0_16] : memref<18x96xf32, #tpu.memory_space<vmem>>, vector<18x96xf32>
    %cst_17 = arith.constant dense<0.000000e+00> : vector<2x96xf32>
    %14 = tpu.matmul %10, %13, %cst_17 {dimension_numbers = #tpu.dot_dimension_numbers<[1], [0], [0], [1], [0, 0, 1, 1], [], []>} : vector<2x18xf32>, vector<18x96xf32>, vector<2x96xf32> -> vector<2x96xf32>
    %15 = arith.addf %12, %14 : vector<2x96xf32>
    %c0_18 = arith.constant 0 : index
    %c0_19 = arith.constant 0 : index
    %16 = vector.load %arg8[%c0_18, %c0_19] : memref<1x96xf32, #tpu.memory_space<vmem>>, vector<1x96xf32>
    %17 = vector.broadcast %16 : vector<1x96xf32> to vector<2x96xf32>
    %18 = arith.addf %15, %17 : vector<2x96xf32>
    %cst_20 = arith.constant 0.000000e+00 : f32
    %19 = vector.broadcast %cst_20 : f32 to vector<2x96xf32>
    %20 = arith.maximumf %18, %19 : vector<2x96xf32>
    %c0_21 = arith.constant 0 : index
    %c32 = arith.constant 32 : index
    %21 = vector.load %arg13[%c0_21, %c32] : memref<2x288xf32, #tpu.memory_space<vmem>>, vector<2x96xf32>
    tpu.vector_store %arg13[%c0_21, %c32], %20 {strides = array<i32>} : memref<2x288xf32, #tpu.memory_space<vmem>>, vector<2x96xf32>,
    %c0_22 = arith.constant 0 : index
    %c0_23 = arith.constant 0 : index
    %22 = vector.load %arg3[%c0_22, %c0_23] : memref<2x50xf32, #tpu.memory_space<vmem>>, vector<2x50xf32>
    %c0_24 = arith.constant 0 : index
    %c0_25 = arith.constant 0 : index
    %23 = vector.load %arg9[%c0_24, %c0_25] : memref<8x160xf32, #tpu.memory_space<vmem>>, vector<8x160xf32>
    %cst_26 = arith.constant dense<0.000000e+00> : vector<2x160xf32>
    %24 = tpu.matmul %0, %23, %cst_26 {dimension_numbers = #tpu.dot_dimension_numbers<[1], [0], [0], [1], [0, 0, 1, 1], [], []>} : vector<2x8xf32>, vector<8x160xf32>, vector<2x160xf32> -> vector<2x160xf32>
    %c0_27 = arith.constant 0 : index
    %c0_28 = arith.constant 0 : index
    %25 = vector.load %arg10[%c0_27, %c0_28] : memref<50x160xf32, #tpu.memory_space<vmem>>, vector<50x160xf32>
    %cst_29 = arith.constant dense<0.000000e+00> : vector<2x160xf32>
    %26 = tpu.matmul %22, %25, %cst_29 {dimension_numbers = #tpu.dot_dimension_numbers<[1], [0], [0], [1], [0, 0, 1, 1], [], []>} : vector<2x50xf32>, vector<50x160xf32>, vector<2x160xf32> -> vector<2x160xf32>
    %27 = arith.addf %24, %26 : vector<2x160xf32>
    %c0_30 = arith.constant 0 : index
    %c0_31 = arith.constant 0 : index
    %28 = vector.load %arg11[%c0_30, %c0_31] : memref<1x160xf32, #tpu.memory_space<vmem>>, vector<1x160xf32>
    %29 = vector.broadcast %28 : vector<1x160xf32> to vector<2x160xf32>
    %30 = arith.addf %27, %29 : vector<2x160xf32>
    %cst_32 = arith.constant 0.000000e+00 : f32
    %31 = vector.broadcast %cst_32 : f32 to vector<2x160xf32>
    %32 = arith.maximumf %30, %31 : vector<2x160xf32>
    %c0_33 = arith.constant 0 : index
    %c128 = arith.constant 128 : index
    %33 = vector.load %arg13[%c0_33, %c128] : memref<2x288xf32, #tpu.memory_space<vmem>>, vector<2x160xf32>
    tpu.vector_store %arg13[%c0_33, %c128], %32 {strides = array<i32>} : memref<2x288xf32, #tpu.memory_space<vmem>>, vector<2x160xf32>,
    return
  }
  func.func @transform_0(%arg0: i32) -> (i32, i32) {
    %c0_i32 = arith.constant 0 : i32
    %c0_i32_0 = arith.constant 0 : i32
    return %arg0, %c0_i32 : i32, i32
  }
  func.func @transform_1(%arg0: i32) -> (i32, i32) {
    %c0_i32 = arith.constant 0 : i32
    %c0_i32_0 = arith.constant 0 : i32
    return %arg0, %c0_i32 : i32, i32
  }
  func.func @transform_2(%arg0: i32) -> (i32, i32) {
    %c0_i32 = arith.constant 0 : i32
    %c0_i32_0 = arith.constant 0 : i32
    return %arg0, %c0_i32 : i32, i32
  }
  func.func @transform_3(%arg0: i32) -> (i32, i32) {
    %c0_i32 = arith.constant 0 : i32
    %c0_i32_0 = arith.constant 0 : i32
    %c0_i32_1 = arith.constant 0 : i32
    return %c0_i32, %c0_i32_0 : i32, i32
  }
  func.func @transform_4(%arg0: i32) -> (i32, i32) {
    %c0_i32 = arith.constant 0 : i32
    %c0_i32_0 = arith.constant 0 : i32
    %c0_i32_1 = arith.constant 0 : i32
    return %c0_i32, %c0_i32_0 : i32, i32
  }
  func.func @transform_5(%arg0: i32) -> (i32, i32) {
    %c0_i32 = arith.constant 0 : i32
    %c0_i32_0 = arith.constant 0 : i32
    %c0_i32_1 = arith.constant 0 : i32
    return %c0_i32, %c0_i32_0 : i32, i32
  }
  func.func @transform_6(%arg0: i32) -> (i32, i32) {
    %c0_i32 = arith.constant 0 : i32
    %c0_i32_0 = arith.constant 0 : i32
    %c0_i32_1 = arith.constant 0 : i32
    return %c0_i32, %c0_i32_0 : i32, i32
  }
  func.func @transform_7(%arg0: i32) -> (i32, i32) {
    %c0_i32 = arith.constant 0 : i32
    %c0_i32_0 = arith.constant 0 : i32
    %c0_i32_1 = arith.constant 0 : i32
    return %c0_i32, %c0_i32_0 : i32, i32
  }
  func.func @transform_8(%arg0: i32) -> (i32, i32) {
    %c0_i32 = arith.constant 0 : i32
    %c0_i32_0 = arith.constant 0 : i32
    %c0_i32_1 = arith.constant 0 : i32
    return %c0_i32, %c0_i32_0 : i32, i32
  }
  func.func @transform_9(%arg0: i32) -> (i32, i32) {
    %c0_i32 = arith.constant 0 : i32
    %c0_i32_0 = arith.constant 0 : i32
    %c0_i32_1 = arith.constant 0 : i32
    return %c0_i32, %c0_i32_0 : i32, i32
  }
  func.func @transform_10(%arg0: i32) -> (i32, i32) {
    %c0_i32 = arith.constant 0 : i32
    %c0_i32_0 = arith.constant 0 : i32
    %c0_i32_1 = arith.constant 0 : i32
    return %c0_i32, %c0_i32_0 : i32, i32
  }
  func.func @transform_11(%arg0: i32) -> (i32, i32) {
    %c0_i32 = arith.constant 0 : i32
    %c0_i32_0 = arith.constant 0 : i32
    return %arg0, %c0_i32 : i32, i32
  }
  func.func @transform_12(%arg0: i32) -> (i32, i32) {
    %c0_i32 = arith.constant 0 : i32
    %c0_i32_0 = arith.constant 0 : i32
    return %arg0, %c0_i32 : i32, i32
  }
}

</mosaic_0001>

<llo_original>
// kernel: forward.1
$region0: #{forward.1}
  #allocation0 [shape = 'u32[]', space=smem, size = 0x4, offset = 0x4, fixed_abs, tag = 'smem constant byte address 0x4 - core index']
  #allocation1 [shape = 'u32[144,128]{1,0:T(1,128)}', space=vmem, size = 0x12000, scoped, tag = 'internal scratch']
  %s0 = inlined_call_operand.vmem [shape: f32[2,8], index: 0, kind: input, shape index: {}]
  %s1 = inlined_call_operand.vmem [shape: f32[2,18], index: 1, kind: input, shape index: {}]
  %s2 = inlined_call_operand.vmem [shape: f32[2,50], index: 2, kind: input, shape index: {}]
  %s3 = inlined_call_operand.vmem [shape: f32[8,32], index: 3, kind: input, shape index: {}]
  %s4 = inlined_call_operand.vmem [shape: f32[1,32], index: 4, kind: input, shape index: {}]
  %s5 = inlined_call_operand.vmem [shape: f32[8,96], index: 5, kind: input, shape index: {}]
  %s6 = inlined_call_operand.vmem [shape: f32[18,96], index: 6, kind: input, shape index: {}]
  %s7 = inlined_call_operand.vmem [shape: f32[1,96], index: 7, kind: input, shape index: {}]
  %s8 = inlined_call_operand.vmem [shape: f32[8,160], index: 8, kind: input, shape index: {}]
  %s9 = inlined_call_operand.hbm [shape: f32[50,160], index: 9, kind: input, shape index: {}]
  %s10 = inlined_call_operand.vmem [shape: f32[1,160], index: 10, kind: input, shape index: {}]
  %s11 = inlined_call_operand.hbm [shape: f32[2,32], index: 11, kind: output, shape index: {0}]
  %s12 = inlined_call_operand.vmem [shape: f32[2,288], index: 12, kind: output, shape index: {1}]
  %13 = xla_tuple %s11, %s12
  %s14 = sld [smem:[#allocation0]]
  $region66: #{forward.1} parent=0
    _
  %s16 = ssub.s32 1, %s14
  %s17 = scalar_select 0, %s16, %s14
  $region1: #{forward.1} parent=0
    #allocation2 [shape = 'u8[57344]{0}', space=vmem, size = 0xe000, scoped, tag = 'input window, operand 9, single buffered']
    #allocation3 [shape = 's32[1]{0}', space=sflag, size = 0x4, scoped, tag = 'scoped memory for forward.1']
    #allocation4 [shape = 's32[1]{0}', space=sflag, size = 0x4, scoped, tag = 'scoped memory for forward.1']
    #allocation5 [shape = 'u8[1024]{0}', space=vmem, size = 0x400, scoped, tag = 'output window, operand 0, single buffered']
    %18 = vsyncpa [#allocation3], 0
    %19 = vsyncpa [#allocation4], 0
    // Predicated region
    $region2: #{forward.1} parent=1 // pred_check
      _
    $region3: #{forward.1} parent=1 // pred_check_branch
      %21 = sbr.rel (0) target = $region5
    $region4: #{forward.1} parent=1 // pred_region
      _
    $region5: #{forward.1} parent=1 // pred_fallthru
      _
    // Predicated region
    $region6: #{forward.1} parent=1 // pred_check
      _
    $region7: #{forward.1} parent=1 // pred_check_branch
      %23 = sbr.rel (0) target = $region9
    $region8: #{forward.1} parent=1 // pred_region
      _
    $region9: #{forward.1} parent=1 // pred_fallthru
      _
    // Predicated region
    $region10: #{forward.1} parent=1 // pred_check
      _
    $region11: #{forward.1} parent=1 // pred_check_branch
      %25 = sbr.rel (0) target = $region13
    $region12: #{forward.1} parent=1 // pred_region
      _
    $region13: #{forward.1} parent=1 // pred_fallthru
      _
    // Predicated region
    $region14: #{forward.1} parent=1 // pred_check
      _
    $region15: #{forward.1} parent=1 // pred_check_branch
      %27 = sbr.rel (0) target = $region17
    $region16: #{forward.1} parent=1 // pred_region
      _
    $region17: #{forward.1} parent=1 // pred_fallthru
      _
    // Predicated region
    $region18: #{forward.1} parent=1 // pred_check
      _
    $region19: #{forward.1} parent=1 // pred_check_branch
      %29 = sbr.rel (0) target = $region21
    $region20: #{forward.1} parent=1 // pred_region
      _
    $region21: #{forward.1} parent=1 // pred_fallthru
      _
    // Predicated region
    $region22: #{forward.1} parent=1 // pred_check
      _
    $region23: #{forward.1} parent=1 // pred_check_branch
      %31 = sbr.rel (0) target = $region25
    $region24: #{forward.1} parent=1 // pred_region
      _
    $region25: #{forward.1} parent=1 // pred_fallthru
      _
    // Predicated region
    $region26: #{forward.1} parent=1 // pred_check
      _
    $region27: #{forward.1} parent=1 // pred_check_branch
      %33 = sbr.rel (0) target = $region29
    $region28: #{forward.1} parent=1 // pred_region
      _
    $region29: #{forward.1} parent=1 // pred_fallthru
      _
    // Predicated region
    $region30: #{forward.1} parent=1 // pred_check
      _
    $region31: #{forward.1} parent=1 // pred_check_branch
      %35 = sbr.rel (0) target = $region33
    $region32: #{forward.1} parent=1 // pred_region
      _
    $region33: #{forward.1} parent=1 // pred_fallthru
      _
    // Predicated region
    $region34: #{forward.1} parent=1 // pred_check
      _
    $region35: #{forward.1} parent=1 // pred_check_branch
      %37 = sbr.rel (0) target = $region37
    $region36: #{forward.1} parent=1 // pred_region
      _
    $region37: #{forward.1} parent=1 // pred_fallthru
      _
    // Predicated region
    $region38: #{forward.1} parent=1 // pred_check
      _
    $region39: #{forward.1} parent=1 // pred_check_branch
      %39 = sbr.rel (0) target = $region41
    $region40: #{forward.1} parent=1 // pred_region
      %s41 = ssub.s32 1792, 1792
      %42 = vsyncadd [#allocation3], %s41
      %s43 = sshll.u32 [#allocation2], 4
      %s44 = int_to_ptr.vmem [resolvable:$true] %s43
      %49 = dma.hbm_to_vmem [thread:$0]  %s9, 1792, %s44, [#allocation3], 256, 256, 16
    $region41: #{forward.1} parent=1 // pred_fallthru
      _
    // Predicated region
    $region42: #{forward.1} parent=1 // pred_check
      _
    $region43: #{forward.1} parent=1 // pred_check_branch
      %51 = sbr.rel (0) target = $region45
    $region44: #{forward.1} parent=1 // pred_region
      _
    $region45: #{forward.1} parent=1 // pred_fallthru
      _
    // Predicated region
    $region46: #{forward.1} parent=1 // pred_check
      _
    $region47: #{forward.1} parent=1 // pred_check_branch
      %53 = sbr.rel (0) target = $region49
    $region48: #{forward.1} parent=1 // pred_region
      %54 = dma.done [#allocation3], 1792
    $region49: #{forward.1} parent=1 // pred_fallthru
      _
    %v55 = vld [vmem:[%s0] sm:$0x3]
    %v56 = vld [vmem:[%s3] sm:$0xff]
    %v57 = vld [vmem:[%s4] sm:$0x1]
    %v59 = vlaneseq
    %v60 = vshrl.u32 %v59, 7
    %v61 = vsub.s32 0, %v60
    %v62 = vrot.slane %v57, %v61
    %vm64 = vcmask 64512
    %v66 = vsel %vm64, %v55, 0
    %68 = vmatprep.subr.mxu0 0.0
    %69 = vmatpush1.msra.mxu0 0.0
    %70 = vmatprep.subr.mxu0 0.0
    %71 = vmatpush1.msra.mxu0 0.0
    %72 = vmatprep.subr.mxu0 0.0
    %73 = vmatpush1.msra.mxu0 0.0
    %74 = vmatprep.subr.mxu0 0.0
    %75 = vmatpush1.msra.mxu0 0.0
    %76 = vmatprep.subr.mxu0 0.0
    %77 = vmatpush1.msra.mxu0 0.0
    %78 = vmatprep.subr.mxu0 0.0
    %79 = vmatpush1.msra.mxu0 0.0
    %80 = vmatprep.subr.mxu0 0.0
    %81 = vmatpush1.msra.mxu0 0.0
    %82 = vmatprep.subr.mxu0 0.0
    %83 = vmatpush1.msra.mxu0 0.0
    %84 = vmatprep.subr.mxu0 0.0
    %85 = vmatpush1.msra.mxu0 0.0
    %86 = vmatprep.subr.mxu0 0.0
    %87 = vmatpush1.msra.mxu0 0.0
    %88 = vmatprep.subr.mxu0 0.0
    %89 = vmatpush1.msra.mxu0 0.0
    %90 = vmatprep.subr.mxu0 0.0
    %91 = vmatpush1.msra.mxu0 0.0
    %92 = vmatprep.subr.mxu0 0.0
    %93 = vmatpush1.msra.mxu0 0.0
    %94 = vmatprep.subr.mxu0 0.0
    %95 = vmatpush1.msra.mxu0 0.0
    %96 = vmatprep.subr.mxu0 0.0
    %97 = vmatpush1.msra.mxu0 0.0
    %98 = vmatprep.subr.mxu0 0.0
    %99 = vmatpush1.msra.mxu0 %v56
    %100 = vmatprep.subr.mxu0 0.0
    %101 = vmatpush2.msra.mxu0 0.0
    %102 = vmatprep.subr.mxu0 0.0
    %103 = vmatpush2.msra.mxu0 0.0
    %104 = vmatprep.subr.mxu0 0.0
    %105 = vmatpush2.msra.mxu0 0.0
    %106 = vmatprep.subr.mxu0 0.0
    %107 = vmatpush2.msra.mxu0 0.0
    %108 = vmatprep.subr.mxu0 0.0
    %109 = vmatpush2.msra.mxu0 0.0
    %110 = vmatprep.subr.mxu0 0.0
    %111 = vmatpush2.msra.mxu0 0.0
    %112 = vmatprep.subr.mxu0 0.0
    %113 = vmatpush2.msra.mxu0 0.0
    %114 = vmatprep.subr.mxu0 0.0
    %115 = vmatpush2.msra.mxu0 0.0
    %116 = vmatprep.subr.mxu0 0.0
    %117 = vmatpush2.msra.mxu0 0.0
    %118 = vmatprep.subr.mxu0 0.0
    %119 = vmatpush2.msra.mxu0 0.0
    %120 = vmatprep.subr.mxu0 0.0
    %121 = vmatpush2.msra.mxu0 0.0
    %122 = vmatprep.subr.mxu0 0.0
    %123 = vmatpush2.msra.mxu0 0.0
    %124 = vmatprep.subr.mxu0 0.0
    %125 = vmatpush2.msra.mxu0 0.0
    %126 = vmatprep.subr.mxu0 0.0
    %127 = vmatpush2.msra.mxu0 0.0
    %128 = vmatprep.subr.mxu0 0.0
    %129 = vmatpush2.msra.mxu0 0.0
    %130 = vmatprep.subr.mxu0 0.0
    %131 = vmatpush2.msra.mxu0 0.0
    %132 = vmatprep.mubr.f32.mxu0 0.0
    %133 = vmatmul.mubr.f32.gmra.mxu0 %v66
    %v134 = vpop.f32.mrf.mxu0
    %v135 = vadd.f32 %v62, %v134
    %v136 = vpop.f32.mrf.mxu0
    %137 = vdwg.mxu0
    %v138 = vmax.f32 %v135, 0.0
    %vm139 = vcmask 254976
    %140 = vst.msk [vmem:[#allocation5] sm:$0x3] %vm139, %v138
    %141 = vst.msk [vmem:[%s12] sm:$0x3] %vm139, %v138
    %v142 = vld [vmem:[%s1] sm:$0x3]
    %v143 = vld [vmem:[%s5] sm:$0xff]
    %v144 = vld [vmem:[%s6] sm:$0xff]
    %v145 = vld [vmem:[%s6 + $0x8] sm:$0xff]
    %v146 = vld [vmem:[%s6 + $0x10] sm:$0x3]
    %vm147 = vcmask 146432
    %v149 = vsel %vm147, %v142, 0
    %vm151 = vcmask 1041408
    %v153 = vsel %vm151, %v146, 0
    %155 = vmatprep.subr.mxu0 0.0
    %156 = vmatpush1.msra.mxu0 0.0
    %157 = vmatprep.subr.mxu0 0.0
    %158 = vmatpush1.msra.mxu0 0.0
    %159 = vmatprep.subr.mxu0 0.0
    %160 = vmatpush1.msra.mxu0 0.0
    %161 = vmatprep.subr.mxu0 0.0
    %162 = vmatpush1.msra.mxu0 0.0
    %163 = vmatprep.subr.mxu0 0.0
    %164 = vmatpush1.msra.mxu0 0.0
    %165 = vmatprep.subr.mxu0 0.0
    %166 = vmatpush1.msra.mxu0 0.0
    %167 = vmatprep.subr.mxu0 0.0
    %168 = vmatpush1.msra.mxu0 0.0
    %169 = vmatprep.subr.mxu0 0.0
    %170 = vmatpush1.msra.mxu0 0.0
    %171 = vmatprep.subr.mxu0 0.0
    %172 = vmatpush1.msra.mxu0 0.0
    %173 = vmatprep.subr.mxu0 0.0
    %174 = vmatpush1.msra.mxu0 0.0
    %175 = vmatprep.subr.mxu0 0.0
    %176 = vmatpush1.msra.mxu0 0.0
    %177 = vmatprep.subr.mxu0 0.0
    %178 = vmatpush1.msra.mxu0 0.0
    %179 = vmatprep.subr.mxu0 0.0
    %180 = vmatpush1.msra.mxu0 0.0
    %181 = vmatprep.subr.mxu0 0.0
    %182 = vmatpush1.msra.mxu0 %v153
    %183 = vmatprep.subr.mxu0 0.0
    %184 = vmatpush1.msra.mxu0 %v145
    %185 = vmatprep.subr.mxu0 0.0
    %186 = vmatpush1.msra.mxu0 %v144
    %187 = vmatprep.subr.mxu0 0.0
    %188 = vmatpush2.msra.mxu0 0.0
    %189 = vmatprep.subr.mxu0 0.0
    %190 = vmatpush2.msra.mxu0 0.0
    %191 = vmatprep.subr.mxu0 0.0
    %192 = vmatpush2.msra.mxu0 0.0
    %193 = vmatprep.subr.mxu0 0.0
    %194 = vmatpush2.msra.mxu0 0.0
    %195 = vmatprep.subr.mxu0 0.0
    %196 = vmatpush2.msra.mxu0 0.0
    %197 = vmatprep.subr.mxu0 0.0
    %198 = vmatpush2.msra.mxu0 0.0
    %199 = vmatprep.subr.mxu0 0.0
    %200 = vmatpush2.msra.mxu0 0.0
    %201 = vmatprep.subr.mxu0 0.0
    %202 = vmatpush2.msra.mxu0 0.0
    %203 = vmatprep.subr.mxu0 0.0
    %204 = vmatpush2.msra.mxu0 0.0
    %205 = vmatprep.subr.mxu0 0.0
    %206 = vmatpush2.msra.mxu0 0.0
    %207 = vmatprep.subr.mxu0 0.0
    %208 = vmatpush2.msra.mxu0 0.0
    %209 = vmatprep.subr.mxu0 0.0
    %210 = vmatpush2.msra.mxu0 0.0
    %211 = vmatprep.subr.mxu0 0.0
    %212 = vmatpush2.msra.mxu0 0.0
    %213 = vmatprep.subr.mxu0 0.0
    %214 = vmatpush2.msra.mxu0 0.0
    %215 = vmatprep.subr.mxu0 0.0
    %216 = vmatpush2.msra.mxu0 0.0
    %217 = vmatprep.subr.mxu0 0.0
    %218 = vmatpush2.msra.mxu0 0.0
    %219 = vmatprep.mubr.f32.mxu0 0.0
    %220 = vmatmul.mubr.f32.gmra.mxu0 %v149
    %v221 = vpop.f32.mrf.mxu0
    %v222 = vadd.f32 0.0, %v221
    %v223 = vpop.f32.mrf.mxu0
    %224 = vdwg.mxu0
    %225 = vmatprep.subr.mxu0 0.0
    %226 = vmatpush1.msra.mxu0 0.0
    %227 = vmatprep.subr.mxu0 0.0
    %228 = vmatpush1.msra.mxu0 0.0
    %229 = vmatprep.subr.mxu0 0.0
    %230 = vmatpush1.msra.mxu0 0.0
    %231 = vmatprep.subr.mxu0 0.0
    %232 = vmatpush1.msra.mxu0 0.0
    %233 = vmatprep.subr.mxu0 0.0
    %234 = vmatpush1.msra.mxu0 0.0
    %235 = vmatprep.subr.mxu0 0.0
    %236 = vmatpush1.msra.mxu0 0.0
    %237 = vmatprep.subr.mxu0 0.0
    %238 = vmatpush1.msra.mxu0 0.0
    %239 = vmatprep.subr.mxu0 0.0
    %240 = vmatpush1.msra.mxu0 0.0
    %241 = vmatprep.subr.mxu0 0.0
    %242 = vmatpush1.msra.mxu0 0.0
    %243 = vmatprep.subr.mxu0 0.0
    %244 = vmatpush1.msra.mxu0 0.0
    %245 = vmatprep.subr.mxu0 0.0
    %246 = vmatpush1.msra.mxu0 0.0
    %247 = vmatprep.subr.mxu0 0.0
    %248 = vmatpush1.msra.mxu0 0.0
    %249 = vmatprep.subr.mxu0 0.0
    %250 = vmatpush1.msra.mxu0 0.0
    %251 = vmatprep.subr.mxu0 0.0
    %252 = vmatpush1.msra.mxu0 0.0
    %253 = vmatprep.subr.mxu0 0.0
    %254 = vmatpush1.msra.mxu0 0.0
    %255 = vmatprep.subr.mxu0 0.0
    %256 = vmatpush1.msra.mxu0 %v143
    %257 = vmatprep.subr.mxu0 0.0
    %258 = vmatpush2.msra.mxu0 0.0
    %259 = vmatprep.subr.mxu0 0.0
    %260 = vmatpush2.msra.mxu0 0.0
    %261 = vmatprep.subr.mxu0 0.0
    %262 = vmatpush2.msra.mxu0 0.0
    %263 = vmatprep.subr.mxu0 0.0
    %264 = vmatpush2.msra.mxu0 0.0
    %265 = vmatprep.subr.mxu0 0.0
    %266 = vmatpush2.msra.mxu0 0.0
    %267 = vmatprep.subr.mxu0 0.0
    %268 = vmatpush2.msra.mxu0 0.0
    %269 = vmatprep.subr.mxu0 0.0
    %270 = vmatpush2.msra.mxu0 0.0
    %271 = vmatprep.subr.mxu0 0.0
    %272 = vmatpush2.msra.mxu0 0.0
    %273 = vmatprep.subr.mxu0 0.0
    %274 = vmatpush2.msra.mxu0 0.0
    %275 = vmatprep.subr.mxu0 0.0
    %276 = vmatpush2.msra.mxu0 0.0
    %277 = vmatprep.subr.mxu0 0.0
    %278 = vmatpush2.msra.mxu0 0.0
    %279 = vmatprep.subr.mxu0 0.0
    %280 = vmatpush2.msra.mxu0 0.0
    %281 = vmatprep.subr.mxu0 0.0
    %282 = vmatpush2.msra.mxu0 0.0
    %283 = vmatprep.subr.mxu0 0.0
    %284 = vmatpush2.msra.mxu0 0.0
    %285 = vmatprep.subr.mxu0 0.0
    %286 = vmatpush2.msra.mxu0 0.0
    %287 = vmatprep.subr.mxu0 0.0
    %288 = vmatpush2.msra.mxu0 0.0
    %289 = vmatprep.mubr.f32.mxu0 0.0
    %290 = vmatmul.mubr.f32.gmra.mxu0 %v66
    %v291 = vpop.f32.mrf.mxu0
    %v292 = vadd.f32 %v222, %v291
    %v293 = vpop.f32.mrf.mxu0
    %294 = vdwg.mxu0
    %v295 = vld [vmem:[%s7] sm:$0x1]
    %v297 = vlaneseq
    %v298 = vshrl.u32 %v297, 7
    %v299 = vsub.s32 0, %v298
    %v300 = vrot.slane %v295, %v299
    %v302 = vadd.f32 %v292, %v300
    %v303 = vmax.f32 %v302, 0.0
    %v306 = vunpack.c.l.s4 1983009808
    %v307 = vunpack.c.0.s8 %v306
    %v308 = vlaneseq
    %v309 = vshrl.u32 %v308, 7
    %v310 = vsub.s32 %v307, %v309
    %v311 = vrot.slane %v303, %v310
    %312 = vrot.lane.b32.xlu0 %v311, 32
    %v313 = vpop.permute.xlu0 %312
    %vm315 = vcmask 1041664
    %316 = vst.msk [vmem:[%s12] sm:$0x3] %vm315, %v313
    %v317 = vld [vmem:[%s2] sm:$0x3]
    %v318 = vld [vmem:[%s8] sm:$0xff]
    %v319 = vld [vmem:[%s8 + $0x8] sm:$0xff]
    %v320 = vld [vmem:[#allocation2] sm:$0xff]
    %v321 = vld [vmem:[#allocation2 + $0x8] sm:$0xff]
    %v322 = vld [vmem:[#allocation2 + $0x10] sm:$0xff]
    %v323 = vld [vmem:[#allocation2 + $0x18] sm:$0xff]
    %v324 = vld [vmem:[#allocation2 + $0x20] sm:$0xff]
    %v325 = vld [vmem:[#allocation2 + $0x28] sm:$0xff]
    %v326 = vld [vmem:[#allocation2 + $0x30] sm:$0xff]
    %v327 = vld [vmem:[#allocation2 + $0x38] sm:$0xff]
    %v328 = vld [vmem:[#allocation2 + $0x40] sm:$0xff]
    %v329 = vld [vmem:[#allocation2 + $0x48] sm:$0xff]
    %v330 = vld [vmem:[#allocation2 + $0x50] sm:$0xff]
    %v331 = vld [vmem:[#allocation2 + $0x58] sm:$0xff]
    %v332 = vld [vmem:[#allocation2 + $0x60] sm:$0x3]
    %v333 = vld [vmem:[#allocation2 + $0x68] sm:$0x3]
    %vm334 = vcmask 408576
    %v336 = vsel %vm334, %v317, 0
    %v339 = vsel %vm151, %v332, 0
    %v342 = vsel %vm151, %v333, 0
    %344 = vmatprep.subr.mxu0 0.0
    %345 = vmatpush1.msra.mxu0 0.0
    %346 = vmatprep.subr.mxu0 0.0
    %347 = vmatpush1.msra.mxu0 0.0
    %348 = vmatprep.subr.mxu0 0.0
    %349 = vmatpush1.msra.mxu0 0.0
    %350 = vmatprep.subr.mxu0 0.0
    %351 = vmatpush1.msra.mxu0 0.0
    %352 = vmatprep.subr.mxu0 0.0
    %353 = vmatpush1.msra.mxu0 0.0
    %354 = vmatprep.subr.mxu0 0.0
    %355 = vmatpush1.msra.mxu0 0.0
    %356 = vmatprep.subr.mxu0 0.0
    %357 = vmatpush1.msra.mxu0 0.0
    %358 = vmatprep.subr.mxu0 0.0
    %359 = vmatpush1.msra.mxu0 0.0
    %360 = vmatprep.subr.mxu0 0.0
    %361 = vmatpush1.msra.mxu0 0.0
    %362 = vmatprep.subr.mxu0 %v342
    %363 = vmatpush1.msra.mxu0 %v339
    %364 = vmatprep.subr.mxu0 %v331
    %365 = vmatpush1.msra.mxu0 %v330
    %366 = vmatprep.subr.mxu0 %v329
    %367 = vmatpush1.msra.mxu0 %v328
    %368 = vmatprep.subr.mxu0 %v327
    %369 = vmatpush1.msra.mxu0 %v326
    %370 = vmatprep.subr.mxu0 %v325
    %371 = vmatpush1.msra.mxu0 %v324
    %372 = vmatprep.subr.mxu0 %v323
    %373 = vmatpush1.msra.mxu0 %v322
    %374 = vmatprep.subr.mxu0 %v321
    %375 = vmatpush1.msra.mxu0 %v320
    %376 = vmatprep.subr.mxu0 0.0
    %377 = vmatpush2.msra.mxu0 0.0
    %378 = vmatprep.subr.mxu0 0.0
    %379 = vmatpush2.msra.mxu0 0.0
    %380 = vmatprep.subr.mxu0 0.0
    %381 = vmatpush2.msra.mxu0 0.0
    %382 = vmatprep.subr.mxu0 0.0
    %383 = vmatpush2.msra.mxu0 0.0
    %384 = vmatprep.subr.mxu0 0.0
    %385 = vmatpush2.msra.mxu0 0.0
    %386 = vmatprep.subr.mxu0 0.0
    %387 = vmatpush2.msra.mxu0 0.0
    %388 = vmatprep.subr.mxu0 0.0
    %389 = vmatpush2.msra.mxu0 0.0
    %390 = vmatprep.subr.mxu0 0.0
    %391 = vmatpush2.msra.mxu0 0.0
    %392 = vmatprep.subr.mxu0 0.0
    %393 = vmatpush2.msra.mxu0 0.0
    %394 = vmatprep.subr.mxu0 0.0
    %395 = vmatpush2.msra.mxu0 0.0
    %396 = vmatprep.subr.mxu0 0.0
    %397 = vmatpush2.msra.mxu0 0.0
    %398 = vmatprep.subr.mxu0 0.0
    %399 = vmatpush2.msra.mxu0 0.0
    %400 = vmatprep.subr.mxu0 0.0
    %401 = vmatpush2.msra.mxu0 0.0
    %402 = vmatprep.subr.mxu0 0.0
    %403 = vmatpush2.msra.mxu0 0.0
    %404 = vmatprep.subr.mxu0 0.0
    %405 = vmatpush2.msra.mxu0 0.0
    %406 = vmatprep.subr.mxu0 0.0
    %407 = vmatpush2.msra.mxu0 0.0
    %408 = vmatprep.mubr.f32.mxu0 0.0
    %409 = vmatmul.mubr.f32.gmra.mxu0 %v336
    %v410 = vpop.f32.mrf.mxu0
    %v411 = vadd.f32 0.0, %v410
    %v412 = vpop.f32.mrf.mxu0
    %v413 = vadd.f32 0.0, %v412
    %414 = vdwg.mxu0
    %415 = vmatprep.subr.mxu0 0.0
    %416 = vmatpush1.msra.mxu0 0.0
    %417 = vmatprep.subr.mxu0 0.0
    %418 = vmatpush1.msra.mxu0 0.0
    %419 = vmatprep.subr.mxu0 0.0
    %420 = vmatpush1.msra.mxu0 0.0
    %421 = vmatprep.subr.mxu0 0.0
    %422 = vmatpush1.msra.mxu0 0.0
    %423 = vmatprep.subr.mxu0 0.0
    %424 = vmatpush1.msra.mxu0 0.0
    %425 = vmatprep.subr.mxu0 0.0
    %426 = vmatpush1.msra.mxu0 0.0
    %427 = vmatprep.subr.mxu0 0.0
    %428 = vmatpush1.msra.mxu0 0.0
    %429 = vmatprep.subr.mxu0 0.0
    %430 = vmatpush1.msra.mxu0 0.0
    %431 = vmatprep.subr.mxu0 0.0
    %432 = vmatpush1.msra.mxu0 0.0
    %433 = vmatprep.subr.mxu0 0.0
    %434 = vmatpush1.msra.mxu0 0.0
    %435 = vmatprep.subr.mxu0 0.0
    %436 = vmatpush1.msra.mxu0 0.0
    %437 = vmatprep.subr.mxu0 0.0
    %438 = vmatpush1.msra.mxu0 0.0
    %439 = vmatprep.subr.mxu0 0.0
    %440 = vmatpush1.msra.mxu0 0.0
    %441 = vmatprep.subr.mxu0 0.0
    %442 = vmatpush1.msra.mxu0 0.0
    %443 = vmatprep.subr.mxu0 0.0
    %444 = vmatpush1.msra.mxu0 0.0
    %445 = vmatprep.subr.mxu0 %v319
    %446 = vmatpush1.msra.mxu0 %v318
    %447 = vmatprep.subr.mxu0 0.0
    %448 = vmatpush2.msra.mxu0 0.0
    %449 = vmatprep.subr.mxu0 0.0
    %450 = vmatpush2.msra.mxu0 0.0
    %451 = vmatprep.subr.mxu0 0.0
    %452 = vmatpush2.msra.mxu0 0.0
    %453 = vmatprep.subr.mxu0 0.0
    %454 = vmatpush2.msra.mxu0 0.0
    %455 = vmatprep.subr.mxu0 0.0
    %456 = vmatpush2.msra.mxu0 0.0
    %457 = vmatprep.subr.mxu0 0.0
    %458 = vmatpush2.msra.mxu0 0.0
    %459 = vmatprep.subr.mxu0 0.0
    %460 = vmatpush2.msra.mxu0 0.0
    %461 = vmatprep.subr.mxu0 0.0
    %462 = vmatpush2.msra.mxu0 0.0
    %463 = vmatprep.subr.mxu0 0.0
    %464 = vmatpush2.msra.mxu0 0.0
    %465 = vmatprep.subr.mxu0 0.0
    %466 = vmatpush2.msra.mxu0 0.0
    %467 = vmatprep.subr.mxu0 0.0
    %468 = vmatpush2.msra.mxu0 0.0
    %469 = vmatprep.subr.mxu0 0.0
    %470 = vmatpush2.msra.mxu0 0.0
    %471 = vmatprep.subr.mxu0 0.0
    %472 = vmatpush2.msra.mxu0 0.0
    %473 = vmatprep.subr.mxu0 0.0
    %474 = vmatpush2.msra.mxu0 0.0
    %475 = vmatprep.subr.mxu0 0.0
    %476 = vmatpush2.msra.mxu0 0.0
    %477 = vmatprep.subr.mxu0 0.0
    %478 = vmatpush2.msra.mxu0 0.0
    %479 = vmatprep.mubr.f32.mxu0 0.0
    %480 = vmatmul.mubr.f32.gmra.mxu0 %v66
    %v481 = vpop.f32.mrf.mxu0
    %v482 = vadd.f32 %v411, %v481
    %v483 = vpop.f32.mrf.mxu0
    %v484 = vadd.f32 %v413, %v483
    %485 = vdwg.mxu0
    %v486 = vld [vmem:[%s10] sm:$0x3]
    %v488 = vlaneseq
    %v489 = vshrl.u32 %v488, 7
    %v490 = vsub.s32 0, %v489
    %v491 = vrot.slane %v486, %v490
    %v492 = vlaneseq
    %v493 = vshrl.u32 %v492, 7
    %v494 = vsub.s32 1, %v493
    %v495 = vrot.slane %v486, %v494
    %v498 = vadd.f32 %v482, %v491
    %v499 = vadd.f32 %v484, %v495
    %v500 = vmax.f32 %v498, 0.0
    %v501 = vmax.f32 %v499, 0.0
    %v504 = vcombine.low %v500, %v501
    %v506 = vunpack.c.l.s4 1983009808
    %v507 = vunpack.c.0.s8 %v506
    %v508 = vlaneseq
    %v509 = vshrl.u32 %v508, 7
    %v510 = vsub.s32 %v507, %v509
    %v511 = vrot.slane %v504, %v510
    %vm513 = vcmask 257026
    %vm514 = vmor %vm513, %vm151
    %515 = vst.msk [vmem:[%s12 + $0x2] sm:$0xf] %vm514, %v511
    // Predicated region
    $region50: #{forward.1} parent=1 // pred_check
      _
    $region51: #{forward.1} parent=1 // pred_check_branch
      %517 = sbr.rel (0) target = $region53
    $region52: #{forward.1} parent=1 // pred_region
      %s519 = ssub.s32 32, 32
      %520 = vsyncadd [#allocation4], %s519
      %s522 = sshll.u32 [#allocation5], 4
      %s523 = int_to_ptr.vmem [resolvable:$true] %s522
      %525 = dma.vmem_to_hbm [thread:$0]  %s523, 32, %s11, [#allocation4]
    $region53: #{forward.1} parent=1 // pred_fallthru
      _
    // Predicated region
    $region54: #{forward.1} parent=1 // pred_check
      _
    $region55: #{forward.1} parent=1 // pred_check_branch
      %527 = sbr.rel (0) target = $region57
    $region56: #{forward.1} parent=1 // pred_region
      _
    $region57: #{forward.1} parent=1 // pred_fallthru
      _
    // Predicated region
    $region58: #{forward.1} parent=1 // pred_check
      _
    $region59: #{forward.1} parent=1 // pred_check_branch
      %529 = sbr.rel (0) target = $region61
    $region60: #{forward.1} parent=1 // pred_region
      %530 = dma.done [#allocation4], 32
    $region61: #{forward.1} parent=1 // pred_fallthru
      _
    // Predicated region
    $region62: #{forward.1} parent=1 // pred_check
      _
    $region63: #{forward.1} parent=1 // pred_check_branch
      %532 = sbr.rel (0) target = $region65
    $region64: #{forward.1} parent=1 // pred_region
      _
    $region65: #{forward.1} parent=1 // pred_fallthru
      _
    %533 = vsyncpa [#allocation3], 1
    %534 = vsyncpa [#allocation4], 1

</llo_original>
